<compile_context>
chip_gen: v5e
topology: v5e:2x2
jax: 0.10.0
libtpu: 0.0.40
codegen_flags: <defaults>
</compile_context>

<pallas_src>
import jax
import jax.numpy as jnp
from jax import lax
from jax.experimental import pallas as pl
from jax.experimental.pallas import tpu as pltpu


def _round_up(x, m):
    return (x + m - 1) // m * m


# ----------------------------------------------------------------------------
# One-shot weight-norm kernel: W = V * (g / ||V||_row), kept in (out, in) layout.
# ----------------------------------------------------------------------------
def weight_norm_kernel(v_ref, g_ref, w_ref):
    v = v_ref[...]                                                   # (out_p, in_p)
    ssq = jnp.sum(v * v, axis=1, keepdims=True)                      # (out_p, 1)
    inv_norm = lax.rsqrt(jnp.maximum(ssq, 1e-30))                    # safe for padded rows
    w_ref[...] = v * (g_ref[...] * inv_norm)


# ----------------------------------------------------------------------------
# Steady-state kernel: y = tanh(x @ W.T + b), W consumed without transpose via
# dot_general contracting both operands on their last (in_nodes) axis.
# ----------------------------------------------------------------------------
def matmul_tanh_kernel(x_ref, w_ref, b_ref, o_ref):
    y = lax.dot_general(
        x_ref[...], w_ref[...],
        dimension_numbers=(((1,), (1,)), ((), ())),
        preferred_element_type=jnp.float32)
    o_ref[...] = jnp.tanh(y + b_ref[...]).astype(o_ref.dtype)


def linear_block(x, v, g, b, *, tile_b=256, tile_n=256):
    batch, in_nodes = x.shape
    out_nodes = v.shape[0]

    # Lane-dense padding: last dims to multiples of 128, batch to multiple of 8.
    in_pad = _round_up(in_nodes, 128)
    tile_n = min(tile_n, _round_up(out_nodes, 128))
    out_pad = _round_up(out_nodes, tile_n)
    tile_b = min(tile_b, _round_up(batch, 8))
    batch_pad = _round_up(batch, tile_b)

    x_p = jnp.zeros((batch_pad, in_pad), jnp.float32).at[:batch, :in_nodes].set(x)
    v_p = jnp.zeros((out_pad, in_pad), jnp.float32).at[:out_nodes, :in_nodes].set(v)
    g_p = jnp.zeros((out_pad, 1), jnp.float32).at[:out_nodes, 0].set(g.reshape(-1))
    b_p = jnp.zeros((1, out_pad), jnp.float32).at[0, :out_nodes].set(b.reshape(-1))

    # --- hoisted weight-norm: runs once, not per batch tile ---
    w = pl.pallas_call(
        weight_norm_kernel,
        out_shape=jax.ShapeDtypeStruct((out_pad, in_pad), jnp.float32),
    )(v_p, g_p)

    # --- tiled matmul + bias + tanh ---
    grid = (batch_pad // tile_b, out_pad // tile_n)
    y = pl.pallas_call(
        matmul_tanh_kernel,
        out_shape=jax.ShapeDtypeStruct((batch_pad, out_pad), jnp.float32),
        grid_spec=pltpu.PrefetchScalarGridSpec(
            num_scalar_prefetch=0,
            grid=grid,
            in_specs=[
                pl.BlockSpec((tile_b, in_pad), lambda i, j: (i, 0)),
                pl.BlockSpec((tile_n, in_pad), lambda i, j: (j, 0)),
                pl.BlockSpec((1, tile_n), lambda i, j: (0, j)),
            ],
            out_specs=pl.BlockSpec((tile_b, tile_n), lambda i, j: (i, j)),
        ),
        compiler_params=pltpu.CompilerParams(
            dimension_semantics=("parallel", "parallel")),
    )(x_p, w, b_p)

    return y[:batch, :out_nodes]


def reference(x, v, g, b):
    inv_norm = 1.0 / jnp.sqrt(jnp.sum(v * v, axis=1, keepdims=True))
    w = v * (g.reshape(-1, 1) * inv_norm)
    return jnp.tanh(x @ w.T + b)


if __name__ == "__main__":
    in_nodes, out_nodes, batch = 32, 32, 16

    key = jax.random.PRNGKey(0)
    kx, kv, kg, kb = jax.random.split(key, 4)

    # Deterministic synthetic parameters (shapes follow nn.Linear / weight_norm dim=0).
    bound = 1.0 / (in_nodes ** 0.5)
    x = jax.random.normal(kx, (batch, in_nodes), dtype=jnp.float32)
    v = jax.random.uniform(kv, (out_nodes, in_nodes), minval=-bound, maxval=bound,
                           dtype=jnp.float32)
    # weight_norm initializes g = ||v|| per row; perturb it slightly so g matters.
    g = jnp.sqrt(jnp.sum(v * v, axis=1)) * (
        1.0 + 0.1 * jax.random.normal(kg, (out_nodes,), dtype=jnp.float32))
    b = jax.random.uniform(kb, (out_nodes,), minval=-bound, maxval=bound,
                           dtype=jnp.float32)

    out = linear_block(x, v, g, b)
    out = jax.block_until_ready(out)

    ref = reference(x, v, g, b)
    assert out.shape == (batch, out_nodes)
    assert jnp.allclose(out, ref, atol=1e-5, rtol=1e-5)

    print("KERNEL_OK")
</pallas_src>

<mosaic_0001>
module attributes {stable_mosaic.version = 11 : i64} {
  func.func @weight_norm_kernel(%arg0: memref<128x128xf32, #tpu.memory_space<vmem>>, %arg1: memref<128x1xf32, #tpu.memory_space<vmem>>, %arg2: memref<128x128xf32, #tpu.memory_space<vmem>>) attributes {dimension_semantics = [], scalar_prefetch = 0 : i64, scratch_operands = 0 : i64, tpu.core_type = #tpu.core_type<tc>} {
    %c0 = arith.constant 0 : index
    %c0_0 = arith.constant 0 : index
    %0 = vector.load %arg0[%c0, %c0_0] : memref<128x128xf32, #tpu.memory_space<vmem>>, vector<128x128xf32>
    %1 = arith.mulf %0, %0 : vector<128x128xf32>
    %cst = arith.constant dense<0.000000e+00> : vector<128xf32>
    %2 = vector.multi_reduction <add>, %1, %cst [1] : vector<128x128xf32> to vector<128xf32>
    %3 = vector.shape_cast %2 : vector<128xf32> to vector<128x1xf32>
    %cst_1 = arith.constant 1.000000e-30 : f32
    %4 = vector.broadcast %cst_1 : f32 to vector<128x1xf32>
    %5 = arith.maximumf %3, %4 : vector<128x1xf32>
    %6 = math.rsqrt %5 : vector<128x1xf32>
    %c0_2 = arith.constant 0 : index
    %c0_3 = arith.constant 0 : index
    %7 = vector.load %arg1[%c0_2, %c0_3] : memref<128x1xf32, #tpu.memory_space<vmem>>, vector<128x1xf32>
    %8 = arith.mulf %7, %6 : vector<128x1xf32>
    %9 = vector.broadcast %8 : vector<128x1xf32> to vector<128x128xf32>
    %10 = arith.mulf %0, %9 : vector<128x128xf32>
    %c0_4 = arith.constant 0 : index
    %c0_5 = arith.constant 0 : index
    %11 = vector.load %arg2[%c0_4, %c0_5] : memref<128x128xf32, #tpu.memory_space<vmem>>, vector<128x128xf32>
    tpu.vector_store %arg2[%c0_4, %c0_5], %10 {strides = array<i32>} : memref<128x128xf32, #tpu.memory_space<vmem>>, vector<128x128xf32>,
    return
  }
}

</mosaic_0001>

<llo_original>
// kernel: tpu_custom_call.1
$region0: #{tpu_custom_call.1}
  #allocation0 [shape = 'u32[]', space=smem, size = 0x4, offset = 0x4, fixed_abs, tag = 'smem constant byte address 0x4 - core index']
  #allocation1 [shape = 'u32[72,128]{1,0:T(1,128)}', space=vmem, size = 0x9000, scoped, tag = 'internal scratch']
  %s0 = inlined_call_operand.vmem [shape: f32[128,128], index: 0, kind: input, shape index: {}]
  %s1 = inlined_call_operand.vmem [shape: f32[128,1], index: 1, kind: input, shape index: {}]
  %s2 = inlined_call_operand.hbm [shape: f32[128,128], index: 2, kind: output, shape index: {}]
  %s3 = sld [smem:[#allocation0]]
  $region18: #{tpu_custom_call.1} parent=0
    _
  %s5 = ssub.s32 1, %s3
  %s6 = scalar_select 0, %s5, %s3
  $region1: #{tpu_custom_call.1} parent=0
    #allocation2 [shape = 'u8[65536]{0}', space=vmem, size = 0x10000, scoped, tag = 'output window, operand 0, single buffered']
    #allocation3 [shape = 's32[1]{0}', space=sflag, size = 0x4, scoped, tag = 'scoped memory for tpu_custom_call.1']
    %7 = vsyncpa [#allocation3], 0
    // Predicated region
    $region2: #{tpu_custom_call.1} parent=1 // pred_check
      _
    $region3: #{tpu_custom_call.1} parent=1 // pred_check_branch
      %9 = sbr.rel (0) target = $region5
    $region4: #{tpu_custom_call.1} parent=1 // pred_region
      _
    $region5: #{tpu_custom_call.1} parent=1 // pred_fallthru
      _
    // Predicated region
    $region6: #{tpu_custom_call.1} parent=1 // pred_check
      _
    $region7: #{tpu_custom_call.1} parent=1 // pred_check_branch
      %11 = sbr.rel (0) target = $region9
    $region8: #{tpu_custom_call.1} parent=1 // pred_region
      _
    $region9: #{tpu_custom_call.1} parent=1 // pred_fallthru
      _
    %v12 = vld [vmem:[%s0] sm:$0xff]
    %v13 = vld [vmem:[%s0 + $0x8] sm:$0xff]
    %v14 = vld [vmem:[%s0 + $0x10] sm:$0xff]
    %v15 = vld [vmem:[%s0 + $0x18] sm:$0xff]
    %v16 = vld [vmem:[%s0 + $0x20] sm:$0xff]
    %v17 = vld [vmem:[%s0 + $0x28] sm:$0xff]
    %v18 = vld [vmem:[%s0 + $0x30] sm:$0xff]
    %v19 = vld [vmem:[%s0 + $0x38] sm:$0xff]
    %v20 = vld [vmem:[%s0 + $0x40] sm:$0xff]
    %v21 = vld [vmem:[%s0 + $0x48] sm:$0xff]
    %v22 = vld [vmem:[%s0 + $0x50] sm:$0xff]
    %v23 = vld [vmem:[%s0 + $0x58] sm:$0xff]
    %v24 = vld [vmem:[%s0 + $0x60] sm:$0xff]
    %v25 = vld [vmem:[%s0 + $0x68] sm:$0xff]
    %v26 = vld [vmem:[%s0 + $0x70] sm:$0xff]
    %v27 = vld [vmem:[%s0 + $0x78] sm:$0xff]
    %v28 = vmul.f32 %v12, %v12
    %v29 = vmul.f32 %v13, %v13
    %v30 = vmul.f32 %v14, %v14
    %v31 = vmul.f32 %v15, %v15
    %v32 = vmul.f32 %v16, %v16
    %v33 = vmul.f32 %v17, %v17
    %v34 = vmul.f32 %v18, %v18
    %v35 = vmul.f32 %v19, %v19
    %v36 = vmul.f32 %v20, %v20
    %v37 = vmul.f32 %v21, %v21
    %v38 = vmul.f32 %v22, %v22
    %v39 = vmul.f32 %v23, %v23
    %v40 = vmul.f32 %v24, %v24
    %v41 = vmul.f32 %v25, %v25
    %v42 = vmul.f32 %v26, %v26
    %v43 = vmul.f32 %v27, %v27
    %44 = vadd.xlane.f32.xlu0 %v28
    %v45 = vpop.xlane.xlu0 %44
    %46 = vadd.xlane.f32.xlu0 %v29
    %v47 = vpop.xlane.xlu0 %46
    %48 = vadd.xlane.f32.xlu0 %v30
    %v49 = vpop.xlane.xlu0 %48
    %50 = vadd.xlane.f32.xlu0 %v31
    %v51 = vpop.xlane.xlu0 %50
    %52 = vadd.xlane.f32.xlu0 %v32
    %v53 = vpop.xlane.xlu0 %52
    %54 = vadd.xlane.f32.xlu0 %v33
    %v55 = vpop.xlane.xlu0 %54
    %56 = vadd.xlane.f32.xlu0 %v34
    %v57 = vpop.xlane.xlu0 %56
    %58 = vadd.xlane.f32.xlu0 %v35
    %v59 = vpop.xlane.xlu0 %58
    %60 = vadd.xlane.f32.xlu0 %v36
    %v61 = vpop.xlane.xlu0 %60
    %62 = vadd.xlane.f32.xlu0 %v37
    %v63 = vpop.xlane.xlu0 %62
    %64 = vadd.xlane.f32.xlu0 %v38
    %v65 = vpop.xlane.xlu0 %64
    %66 = vadd.xlane.f32.xlu0 %v39
    %v67 = vpop.xlane.xlu0 %66
    %68 = vadd.xlane.f32.xlu0 %v40
    %v69 = vpop.xlane.xlu0 %68
    %70 = vadd.xlane.f32.xlu0 %v41
    %v71 = vpop.xlane.xlu0 %70
    %72 = vadd.xlane.f32.xlu0 %v42
    %v73 = vpop.xlane.xlu0 %72
    %74 = vadd.xlane.f32.xlu0 %v43
    %v75 = vpop.xlane.xlu0 %74
    %v76 = vmax.f32 %v45, 1e-30
    %v77 = vmax.f32 %v47, 1e-30
    %v78 = vmax.f32 %v49, 1e-30
    %v79 = vmax.f32 %v51, 1e-30
    %v80 = vmax.f32 %v53, 1e-30
    %v81 = vmax.f32 %v55, 1e-30
    %v82 = vmax.f32 %v57, 1e-30
    %v83 = vmax.f32 %v59, 1e-30
    %v84 = vmax.f32 %v61, 1e-30
    %v85 = vmax.f32 %v63, 1e-30
    %v86 = vmax.f32 %v65, 1e-30
    %v87 = vmax.f32 %v67, 1e-30
    %v88 = vmax.f32 %v69, 1e-30
    %v89 = vmax.f32 %v71, 1e-30
    %v90 = vmax.f32 %v73, 1e-30
    %v91 = vmax.f32 %v75, 1e-30
    %v92 = vrsqrt.pop %v76
    %v93 = vmul.f32 %v92, %v76
    %v94 = vmul.f32 %v93, %v92
    %v95 = vmul.f32 0.5, %v94
    %v96 = vsub.f32 1.5, %v95
    %v97 = vmul.f32 %v92, %v96
    %vm98 = vweird.f32 %v76
    %vm99 = vweird.f32 %v92
    %vm100 = vmor %vm98, %vm99
    %v101 = vsel %vm100, %v92, %v97
    %v102 = vrsqrt.pop %v77
    %v103 = vmul.f32 %v102, %v77
    %v104 = vmul.f32 %v103, %v102
    %v105 = vmul.f32 0.5, %v104
    %v106 = vsub.f32 1.5, %v105
    %v107 = vmul.f32 %v102, %v106
    %vm108 = vweird.f32 %v77
    %vm109 = vweird.f32 %v102
    %vm110 = vmor %vm108, %vm109
    %v111 = vsel %vm110, %v102, %v107
    %v112 = vrsqrt.pop %v78
    %v113 = vmul.f32 %v112, %v78
    %v114 = vmul.f32 %v113, %v112
    %v115 = vmul.f32 0.5, %v114
    %v116 = vsub.f32 1.5, %v115
    %v117 = vmul.f32 %v112, %v116
    %vm118 = vweird.f32 %v78
    %vm119 = vweird.f32 %v112
    %vm120 = vmor %vm118, %vm119
    %v121 = vsel %vm120, %v112, %v117
    %v122 = vrsqrt.pop %v79
    %v123 = vmul.f32 %v122, %v79
    %v124 = vmul.f32 %v123, %v122
    %v125 = vmul.f32 0.5, %v124
    %v126 = vsub.f32 1.5, %v125
    %v127 = vmul.f32 %v122, %v126
    %vm128 = vweird.f32 %v79
    %vm129 = vweird.f32 %v122
    %vm130 = vmor %vm128, %vm129
    %v131 = vsel %vm130, %v122, %v127
    %v132 = vrsqrt.pop %v80
    %v133 = vmul.f32 %v132, %v80
    %v134 = vmul.f32 %v133, %v132
    %v135 = vmul.f32 0.5, %v134
    %v136 = vsub.f32 1.5, %v135
    %v137 = vmul.f32 %v132, %v136
    %vm138 = vweird.f32 %v80
    %vm139 = vweird.f32 %v132
    %vm140 = vmor %vm138, %vm139
    %v141 = vsel %vm140, %v132, %v137
    %v142 = vrsqrt.pop %v81
    %v143 = vmul.f32 %v142, %v81
    %v144 = vmul.f32 %v143, %v142
    %v145 = vmul.f32 0.5, %v144
    %v146 = vsub.f32 1.5, %v145
    %v147 = vmul.f32 %v142, %v146
    %vm148 = vweird.f32 %v81
    %vm149 = vweird.f32 %v142
    %vm150 = vmor %vm148, %vm149
    %v151 = vsel %vm150, %v142, %v147
    %v152 = vrsqrt.pop %v82
    %v153 = vmul.f32 %v152, %v82
    %v154 = vmul.f32 %v153, %v152
    %v155 = vmul.f32 0.5, %v154
    %v156 = vsub.f32 1.5, %v155
    %v157 = vmul.f32 %v152, %v156
    %vm158 = vweird.f32 %v82
    %vm159 = vweird.f32 %v152
    %vm160 = vmor %vm158, %vm159
    %v161 = vsel %vm160, %v152, %v157
    %v162 = vrsqrt.pop %v83
    %v163 = vmul.f32 %v162, %v83
    %v164 = vmul.f32 %v163, %v162
    %v165 = vmul.f32 0.5, %v164
    %v166 = vsub.f32 1.5, %v165
    %v167 = vmul.f32 %v162, %v166
    %vm168 = vweird.f32 %v83
    %vm169 = vweird.f32 %v162
    %vm170 = vmor %vm168, %vm169
    %v171 = vsel %vm170, %v162, %v167
    %v172 = vrsqrt.pop %v84
    %v173 = vmul.f32 %v172, %v84
    %v174 = vmul.f32 %v173, %v172
    %v175 = vmul.f32 0.5, %v174
    %v176 = vsub.f32 1.5, %v175
    %v177 = vmul.f32 %v172, %v176
    %vm178 = vweird.f32 %v84
    %vm179 = vweird.f32 %v172
    %vm180 = vmor %vm178, %vm179
    %v181 = vsel %vm180, %v172, %v177
    %v182 = vrsqrt.pop %v85
    %v183 = vmul.f32 %v182, %v85
    %v184 = vmul.f32 %v183, %v182
    %v185 = vmul.f32 0.5, %v184
    %v186 = vsub.f32 1.5, %v185
    %v187 = vmul.f32 %v182, %v186
    %vm188 = vweird.f32 %v85
    %vm189 = vweird.f32 %v182
    %vm190 = vmor %vm188, %vm189
    %v191 = vsel %vm190, %v182, %v187
    %v192 = vrsqrt.pop %v86
    %v193 = vmul.f32 %v192, %v86
    %v194 = vmul.f32 %v193, %v192
    %v195 = vmul.f32 0.5, %v194
    %v196 = vsub.f32 1.5, %v195
    %v197 = vmul.f32 %v192, %v196
    %vm198 = vweird.f32 %v86
    %vm199 = vweird.f32 %v192
    %vm200 = vmor %vm198, %vm199
    %v201 = vsel %vm200, %v192, %v197
    %v202 = vrsqrt.pop %v87
    %v203 = vmul.f32 %v202, %v87
    %v204 = vmul.f32 %v203, %v202
    %v205 = vmul.f32 0.5, %v204
    %v206 = vsub.f32 1.5, %v205
    %v207 = vmul.f32 %v202, %v206
    %vm208 = vweird.f32 %v87
    %vm209 = vweird.f32 %v202
    %vm210 = vmor %vm208, %vm209
    %v211 = vsel %vm210, %v202, %v207
    %v212 = vrsqrt.pop %v88
    %v213 = vmul.f32 %v212, %v88
    %v214 = vmul.f32 %v213, %v212
    %v215 = vmul.f32 0.5, %v214
    %v216 = vsub.f32 1.5, %v215
    %v217 = vmul.f32 %v212, %v216
    %vm218 = vweird.f32 %v88
    %vm219 = vweird.f32 %v212
    %vm220 = vmor %vm218, %vm219
    %v221 = vsel %vm220, %v212, %v217
    %v222 = vrsqrt.pop %v89
    %v223 = vmul.f32 %v222, %v89
    %v224 = vmul.f32 %v223, %v222
    %v225 = vmul.f32 0.5, %v224
    %v226 = vsub.f32 1.5, %v225
    %v227 = vmul.f32 %v222, %v226
    %vm228 = vweird.f32 %v89
    %vm229 = vweird.f32 %v222
    %vm230 = vmor %vm228, %vm229
    %v231 = vsel %vm230, %v222, %v227
    %v232 = vrsqrt.pop %v90
    %v233 = vmul.f32 %v232, %v90
    %v234 = vmul.f32 %v233, %v232
    %v235 = vmul.f32 0.5, %v234
    %v236 = vsub.f32 1.5, %v235
    %v237 = vmul.f32 %v232, %v236
    %vm238 = vweird.f32 %v90
    %vm239 = vweird.f32 %v232
    %vm240 = vmor %vm238, %vm239
    %v241 = vsel %vm240, %v232, %v237
    %v242 = vrsqrt.pop %v91
    %v243 = vmul.f32 %v242, %v91
    %v244 = vmul.f32 %v243, %v242
    %v245 = vmul.f32 0.5, %v244
    %v246 = vsub.f32 1.5, %v245
    %v247 = vmul.f32 %v242, %v246
    %vm248 = vweird.f32 %v91
    %vm249 = vweird.f32 %v242
    %vm250 = vmor %vm248, %vm249
    %v251 = vsel %vm250, %v242, %v247
    %v252 = vld [vmem:[%s1] sm:$0xff]
    %v253 = vld [vmem:[%s1 + $0x8] sm:$0xff]
    %v254 = vld [vmem:[%s1 + $0x10] sm:$0xff]
    %v255 = vld [vmem:[%s1 + $0x18] sm:$0xff]
    %v256 = vld [vmem:[%s1 + $0x20] sm:$0xff]
    %v257 = vld [vmem:[%s1 + $0x28] sm:$0xff]
    %v258 = vld [vmem:[%s1 + $0x30] sm:$0xff]
    %v259 = vld [vmem:[%s1 + $0x38] sm:$0xff]
    %v260 = vld [vmem:[%s1 + $0x40] sm:$0xff]
    %v261 = vld [vmem:[%s1 + $0x48] sm:$0xff]
    %v262 = vld [vmem:[%s1 + $0x50] sm:$0xff]
    %v263 = vld [vmem:[%s1 + $0x58] sm:$0xff]
    %v264 = vld [vmem:[%s1 + $0x60] sm:$0xff]
    %v265 = vld [vmem:[%s1 + $0x68] sm:$0xff]
    %v266 = vld [vmem:[%s1 + $0x70] sm:$0xff]
    %v267 = vld [vmem:[%s1 + $0x78] sm:$0xff]
    %v268 = vmul.f32 %v252, %v101
    %v269 = vmul.f32 %v253, %v111
    %v270 = vmul.f32 %v254, %v121
    %v271 = vmul.f32 %v255, %v131
    %v272 = vmul.f32 %v256, %v141
    %v273 = vmul.f32 %v257, %v151
    %v274 = vmul.f32 %v258, %v161
    %v275 = vmul.f32 %v259, %v171
    %v276 = vmul.f32 %v260, %v181
    %v277 = vmul.f32 %v261, %v191
    %v278 = vmul.f32 %v262, %v201
    %v279 = vmul.f32 %v263, %v211
    %v280 = vmul.f32 %v264, %v221
    %v281 = vmul.f32 %v265, %v231
    %v282 = vmul.f32 %v266, %v241
    %v283 = vmul.f32 %v267, %v251
    %285 = vset.pattern.permute.xlu0 0
    %286 = vperm.xlu0 %285, %v268
    %v287 = vpop.permute.xlu0 %286
    %290 = vset.pattern.permute.xlu0 0
    %291 = vperm.xlu0 %290, %v269
    %v292 = vpop.permute.xlu0 %291
    %295 = vset.pattern.permute.xlu0 0
    %296 = vperm.xlu0 %295, %v270
    %v297 = vpop.permute.xlu0 %296
    %300 = vset.pattern.permute.xlu0 0
    %301 = vperm.xlu0 %300, %v271
    %v302 = vpop.permute.xlu0 %301
    %305 = vset.pattern.permute.xlu0 0
    %306 = vperm.xlu0 %305, %v272
    %v307 = vpop.permute.xlu0 %306
    %310 = vset.pattern.permute.xlu0 0
    %311 = vperm.xlu0 %310, %v273
    %v312 = vpop.permute.xlu0 %311
    %315 = vset.pattern.permute.xlu0 0
    %316 = vperm.xlu0 %315, %v274
    %v317 = vpop.permute.xlu0 %316
    %320 = vset.pattern.permute.xlu0 0
    %321 = vperm.xlu0 %320, %v275
    %v322 = vpop.permute.xlu0 %321
    %325 = vset.pattern.permute.xlu0 0
    %326 = vperm.xlu0 %325, %v276
    %v327 = vpop.permute.xlu0 %326
    %330 = vset.pattern.permute.xlu0 0
    %331 = vperm.xlu0 %330, %v277
    %v332 = vpop.permute.xlu0 %331
    %335 = vset.pattern.permute.xlu0 0
    %336 = vperm.xlu0 %335, %v278
    %v337 = vpop.permute.xlu0 %336
    %340 = vset.pattern.permute.xlu0 0
    %341 = vperm.xlu0 %340, %v279
    %v342 = vpop.permute.xlu0 %341
    %345 = vset.pattern.permute.xlu0 0
    %346 = vperm.xlu0 %345, %v280
    %v347 = vpop.permute.xlu0 %346
    %350 = vset.pattern.permute.xlu0 0
    %351 = vperm.xlu0 %350, %v281
    %v352 = vpop.permute.xlu0 %351
    %355 = vset.pattern.permute.xlu0 0
    %356 = vperm.xlu0 %355, %v282
    %v357 = vpop.permute.xlu0 %356
    %360 = vset.pattern.permute.xlu0 0
    %361 = vperm.xlu0 %360, %v283
    %v362 = vpop.permute.xlu0 %361
    %v364 = vmul.f32 %v12, %v287
    %v365 = vmul.f32 %v13, %v292
    %v366 = vmul.f32 %v14, %v297
    %v367 = vmul.f32 %v15, %v302
    %v368 = vmul.f32 %v16, %v307
    %v369 = vmul.f32 %v17, %v312
    %v370 = vmul.f32 %v18, %v317
    %v371 = vmul.f32 %v19, %v322
    %v372 = vmul.f32 %v20, %v327
    %v373 = vmul.f32 %v21, %v332
    %v374 = vmul.f32 %v22, %v337
    %v375 = vmul.f32 %v23, %v342
    %v376 = vmul.f32 %v24, %v347
    %v377 = vmul.f32 %v25, %v352
    %v378 = vmul.f32 %v26, %v357
    %v379 = vmul.f32 %v27, %v362
    %380 = vst [vmem:[#allocation2] sm:$0xff] %v364
    %381 = vst [vmem:[#allocation2 + $0x8] sm:$0xff] %v365
    %382 = vst [vmem:[#allocation2 + $0x10] sm:$0xff] %v366
    %383 = vst [vmem:[#allocation2 + $0x18] sm:$0xff] %v367
    %384 = vst [vmem:[#allocation2 + $0x20] sm:$0xff] %v368
    %385 = vst [vmem:[#allocation2 + $0x28] sm:$0xff] %v369
    %386 = vst [vmem:[#allocation2 + $0x30] sm:$0xff] %v370
    %387 = vst [vmem:[#allocation2 + $0x38] sm:$0xff] %v371
    %388 = vst [vmem:[#allocation2 + $0x40] sm:$0xff] %v372
    %389 = vst [vmem:[#allocation2 + $0x48] sm:$0xff] %v373
    %390 = vst [vmem:[#allocation2 + $0x50] sm:$0xff] %v374
    %391 = vst [vmem:[#allocation2 + $0x58] sm:$0xff] %v375
    %392 = vst [vmem:[#allocation2 + $0x60] sm:$0xff] %v376
    %393 = vst [vmem:[#allocation2 + $0x68] sm:$0xff] %v377
    %394 = vst [vmem:[#allocation2 + $0x70] sm:$0xff] %v378
    %395 = vst [vmem:[#allocation2 + $0x78] sm:$0xff] %v379
    // Predicated region
    $region10: #{tpu_custom_call.1} parent=1 // pred_check
      _
    $region11: #{tpu_custom_call.1} parent=1 // pred_check_branch
      %397 = sbr.rel (0) target = $region13
    $region12: #{tpu_custom_call.1} parent=1 // pred_region
      %399 = vsyncadd [#allocation3], 0
      %s400 = sshll.u32 [#allocation2], 4
      %s401 = int_to_ptr.vmem [resolvable:$true] %s400
      %s402 = sshll.u32 %s2, 4
      %s403 = int_to_ptr.hbm [resolvable:$true] %s402
      %408 = dma.vmem_to_hbm [thread:$0]  %s401, 2048, %s403, [#allocation3], 128, 128, 8
    $region13: #{tpu_custom_call.1} parent=1 // pred_fallthru
      _
    // Predicated region
    $region14: #{tpu_custom_call.1} parent=1 // pred_check
      _
    $region15: #{tpu_custom_call.1} parent=1 // pred_check_branch
      %410 = sbr.rel (0) target = $region17
    $region16: #{tpu_custom_call.1} parent=1 // pred_region
      %412 = dma.done [#allocation3], 2048
    $region17: #{tpu_custom_call.1} parent=1 // pred_fallthru
      _
    %413 = vsyncpa [#allocation3], 1

</llo_original>
